<compile_context>
chip_gen: v6e
topology: v6e:2x2x1
jax: 0.10.0
libtpu: 0.0.40
codegen_flags: <defaults>
</compile_context>

<pallas_src>
import functools

import jax
import jax.numpy as jnp
from jax.experimental import pallas as pl
from jax.experimental.pallas import tpu as pltpu

_LANES = 128
_SUBLANES = 8
_MAX_TILE_SUBLANES = 256          # 256*128 = 32768 timesteps per tile


def _loss1_kernel(bits_ref, pred_ref, out_ref, *, w0, w1, hand_idx,
                  void_let_serve):
    """One grid step over a (TSUB, 128) lane-dense slab of timesteps.

    bits_ref : [TSUB, 128] int32 — bit k set  <=>  y_target[..., k] == 1
    pred_ref : [K, TSUB, 128]    — row 0 stroke, 1 player, 2 hand,
                                   3..5 point, 6.. serve
    out_ref  : [1, 8, 128] f32   — per-tile partial sums (finalized in JAX)
    """
    bits = bits_ref[...]
    pr = pred_ref[...].astype(jnp.float32)

    is1 = lambda k: (bits & (1 << k)) != 0      # label bit k set
    any1 = bits != 0                            # "1 in sequence"

    p_stroke, p_player, p_hand = pr[0], pr[1], pr[2]
    f32 = jnp.float32

    # ---- BCE heads: one log per head via branch selection ----
    w_s = jnp.where(any1, f32(w1), f32(w0))
    bce_stroke = -w_s * jnp.log(jnp.where(any1, p_stroke, 1.0 - p_stroke))

    y_player1 = jnp.logical_not(is1(0))         # y_player == 1 <=> seq[0] != 1
    bce_player = -jnp.log(jnp.where(y_player1, p_player, 1.0 - p_player))

    y_hand1 = jnp.logical_not(is1(hand_idx))
    bce_hand = -jnp.log(jnp.where(y_hand1, p_hand, 1.0 - p_hand))

    # ---- categorical heads: gather-by-select, one log each ----
    p_point = jnp.where(is1(4), pr[3], jnp.where(is1(5), pr[4], pr[5]))
    cce_point = -jnp.log(p_point)

    if void_let_serve:                          # serve_no_void(): classes 0..3
        p_serve = jnp.where(is1(2), pr[6],
                  jnp.where(is1(3), pr[7],
                  jnp.where(is1(6), pr[8], pr[9])))
    else:                                       # serve(): classes 0..4
        p_serve = jnp.where(is1(2), pr[6],
                  jnp.where(is1(3), pr[7],
                  jnp.where(is1(6), pr[8],
                  jnp.where(is1(7), pr[9], pr[10]))))
    cce_serve = -jnp.log(p_serve)

    y_stroke = any1.astype(f32)
    per_step = bce_stroke + y_stroke * (bce_player + bce_hand +
                                        cce_point + cce_serve)    # [TSUB,128]

    # Fold sublane groups into a single (8,128) vreg with plain VPU adds;
    # the one expensive cross-lane reduce happens once, in JAX.
    tsub = per_step.shape[0]
    part = per_step[0:_SUBLANES, :]
    for j in range(1, tsub // _SUBLANES):
        part = part + per_step[j * _SUBLANES:(j + 1) * _SUBLANES, :]
    out_ref[...] = part[None]


def loss_1(y_pred, y_target, *, void_let_serve=True, w_0=0.51, w_1=19.05):
    """Pallas implementation of Loss_1.forward. Returns a shape-[1] array."""
    y_ps, y_pp, y_ph, y_ppt, y_psv = y_pred
    B, S, C = y_target.shape
    N = B * S
    hand_idx = 7 if void_let_serve else 8
    n_serve = 4 if void_let_serve else 5
    assert C > hand_idx, "y_target channel dim too small for this mode"
    assert y_ppt.shape[-1] >= 3 and y_psv.shape[-1] >= n_serve

    # ---- lane-dense packing (wrapper-side layout plumbing only) ----
    # Labels -> one int32 bitmask per timestep (bit k <=> label[k] == 1).
    m = (y_target.reshape(N, C) == 1)
    weights = (2 ** jnp.arange(C, dtype=jnp.int32)).astype(jnp.int32)
    bits = jnp.sum(m.astype(jnp.int32) * weights[None, :], axis=-1)   # [N]

    # Fuse all prediction heads into a single [N, K] slab (native dtype).
    packed = jnp.concatenate(
        [y_ps.reshape(N, 1), y_pp.reshape(N, 1), y_ph.reshape(N, 1),
         y_ppt.reshape(N, -1)[:, :3], y_psv.reshape(N, -1)[:, :n_serve]],
        axis=-1)
    K = packed.shape[-1]

    # Pad N up to whole (TSUB, 128) tiles; pad rows contribute exactly 0:
    #   bits == 0  -> y_stroke == 0 gates the bce/cce tail (finite logs),
    #   stroke prob padded with 0 -> -w0*log(1-0) == 0 for the un-gated term.
    ns = -(-N // _LANES)
    tsub = min(_MAX_TILE_SUBLANES, -(-ns // 32) * 32)
    ns_pad = -(-ns // tsub) * tsub
    n_pad = ns_pad * _LANES
    grid = ns_pad // tsub

    pad_n = n_pad - N
    if pad_n:
        bits = jnp.concatenate([bits, jnp.zeros((pad_n,), jnp.int32)])
        pad_block = jnp.concatenate(
            [jnp.zeros((pad_n, 1), packed.dtype),
             jnp.full((pad_n, K - 1), 0.5, packed.dtype)], axis=-1)
        packed = jnp.concatenate([packed, pad_block], axis=0)

    bits2d = bits.reshape(ns_pad, _LANES)                    # [NS, 128] int32
    pred3d = packed.T.reshape(K, ns_pad, _LANES)             # [K, NS, 128]

    kernel = functools.partial(
        _loss1_kernel, w0=float(w_0), w1=float(w_1),
        hand_idx=hand_idx, void_let_serve=void_let_serve)

    partials = pl.pallas_call(
        kernel,
        out_shape=jax.ShapeDtypeStruct((grid, _SUBLANES, _LANES), jnp.float32),
        grid_spec=pltpu.PrefetchScalarGridSpec(
            num_scalar_prefetch=0,
            grid=(grid,),
            in_specs=[
                pl.BlockSpec((tsub, _LANES), lambda i: (i, 0)),
                pl.BlockSpec((K, tsub, _LANES), lambda i: (0, i, 0)),
            ],
            out_specs=pl.BlockSpec((1, _SUBLANES, _LANES),
                                   lambda i: (i, 0, 0)),
        ),
        compiler_params=pltpu.CompilerParams(
            dimension_semantics=("parallel",)),
    )(bits2d, pred3d)

    # Tiny finalize in JAX: one cross-lane reduce of [grid, 8, 128] + divide.
    return (jnp.sum(partials) / N).reshape(1)


def _loss1_reference(y_pred, y_target, *, void_let_serve=True,
                     w_0=0.51, w_1=19.05):
    """Pure-JAX reference mirroring the PyTorch loops, for validation."""
    ps, pp, ph, ppt, psv = y_pred
    yt = y_target.astype(jnp.float32)
    hand_idx = 7 if void_let_serve else 8

    y_stroke = jnp.any(yt == 1.0, axis=-1, keepdims=True).astype(jnp.float32)
    y_player = jnp.where(yt[..., 0:1] == 1.0, 0.0, 1.0)
    y_hand = jnp.where(yt[..., hand_idx:hand_idx + 1] == 1.0, 0.0, 1.0)

    y_point = jnp.where(yt[..., 4] == 1.0, 0, jnp.where(yt[..., 5] == 1.0, 1, 2))
    if void_let_serve:
        y_serve = jnp.where(yt[..., 2] == 1.0, 0,
                            jnp.where(yt[..., 3] == 1.0, 1,
                                      jnp.where(yt[..., 6] == 1.0, 2, 3)))
    else:
        y_serve = jnp.where(yt[..., 2] == 1.0, 0,
                            jnp.where(yt[..., 3] == 1.0, 1,
                                      jnp.where(yt[..., 6] == 1.0, 2,
                                                jnp.where(yt[..., 7] == 1.0, 3, 4))))

    bce_s = -(w_1 * y_stroke * jnp.log(ps) + w_0 * (1 - y_stroke) * jnp.log(1 - ps))
    bce_p = -(y_player * jnp.log(pp) + (1 - y_player) * jnp.log(1 - pp))
    bce_h = -(y_hand * jnp.log(ph) + (1 - y_hand) * jnp.log(1 - ph))
    cce_pt = -jnp.log(jnp.take_along_axis(ppt, y_point[..., None], axis=-1))
    cce_sv = -jnp.log(jnp.take_along_axis(psv, y_serve[..., None], axis=-1))

    per = bce_s + y_stroke * (bce_p + bce_h + cce_pt + cce_sv)   # [B,S,1]
    B, S = per.shape[:2]
    return jnp.sum(per, axis=(0, 1)) / (B * S)                   # shape [1]


if __name__ == "__main__":
    B, S, C = 2, 8, 8   # adapt_1_no_void needs label indices 0..7
    key = jax.random.PRNGKey(0)
    k_t, k_s, k_p, k_h, k_pt, k_sv = jax.random.split(key, 6)

    # multi-hot targets
    y_target = jax.random.bernoulli(k_t, 0.3, (B, S, C)).astype(jnp.float32)

    # predictions strictly inside (0,1); point/serve are softmax distributions
    y_pred_stroke = jax.nn.sigmoid(jax.random.normal(k_s, (B, S, 1)))
    y_pred_player = jax.nn.sigmoid(jax.random.normal(k_p, (B, S, 1)))
    y_pred_hand = jax.nn.sigmoid(jax.random.normal(k_h, (B, S, 1)))
    y_pred_point = jax.nn.softmax(jax.random.normal(k_pt, (B, S, 3)), axis=-1)
    y_pred_serve = jax.nn.softmax(jax.random.normal(k_sv, (B, S, 4)), axis=-1)

    y_pred = (y_pred_stroke, y_pred_player, y_pred_hand,
              y_pred_point, y_pred_serve)

    out = jax.block_until_ready(loss_1(y_pred, y_target))
    ref = _loss1_reference(y_pred, y_target)
    assert out.shape == (1,)
    assert jnp.allclose(out, ref, rtol=1e-5, atol=1e-5), (out, ref)

    print("KERNEL_OK")
</pallas_src>

<mosaic_0001>
module attributes {stable_mosaic.version = 11 : i64} {
  func.func @_loss1_kernel(%arg0: i32, %arg1: memref<32x128xi32, #tpu.memory_space<vmem>>, %arg2: memref<10x32x128xf32, #tpu.memory_space<vmem>>, %arg3: memref<1x8x128xf32, #tpu.memory_space<vmem>>) attributes {dimension_semantics = [#tpu.dimension_semantics<parallel>], iteration_bounds = array<i64: 1>, scalar_prefetch = 0 : i64, scratch_operands = 0 : i64, tpu.core_type = #tpu.core_type<tc>, window_params = [{transform_indices = @transform_0, window_bounds = array<i64: 32, 128>}, {transform_indices = @transform_1, window_bounds = array<i64: 10, 32, 128>}, {transform_indices = @transform_2, window_bounds = array<i64: 1, 8, 128>}]} {
    %c0 = arith.constant 0 : index
    %c0_0 = arith.constant 0 : index
    %0 = vector.load %arg1[%c0, %c0_0] : memref<32x128xi32, #tpu.memory_space<vmem>>, vector<32x128xi32>
    %c0_1 = arith.constant 0 : index
    %c0_2 = arith.constant 0 : index
    %c0_3 = arith.constant 0 : index
    %1 = vector.load %arg2[%c0_1, %c0_2, %c0_3] : memref<10x32x128xf32, #tpu.memory_space<vmem>>, vector<10x32x128xf32>
    %c0_i32 = arith.constant 0 : i32
    %2 = vector.broadcast %c0_i32 : i32 to vector<32x128xi32>
    %3 = arith.cmpi ne, %0, %2 : vector<32x128xi32>
    %4 = vector.extract_strided_slice %1 {offsets = [0, 0, 0], sizes = [1, 32, 128], strides = [1, 1, 1]} : vector<10x32x128xf32> to vector<1x32x128xf32>
    %5 = vector.shape_cast %4 : vector<1x32x128xf32> to vector<32x128xf32>
    %6 = vector.extract_strided_slice %1 {offsets = [1, 0, 0], sizes = [1, 32, 128], strides = [1, 1, 1]} : vector<10x32x128xf32> to vector<1x32x128xf32>
    %7 = vector.shape_cast %6 : vector<1x32x128xf32> to vector<32x128xf32>
    %8 = vector.extract_strided_slice %1 {offsets = [2, 0, 0], sizes = [1, 32, 128], strides = [1, 1, 1]} : vector<10x32x128xf32> to vector<1x32x128xf32>
    %9 = vector.shape_cast %8 : vector<1x32x128xf32> to vector<32x128xf32>
    %cst = arith.constant 1.905000e+01 : f32
    %cst_4 = arith.constant 5.100000e-01 : f32
    %10 = vector.broadcast %cst : f32 to vector<32x128xf32>
    %11 = vector.broadcast %cst_4 : f32 to vector<32x128xf32>
    %12 = arith.select %3, %10, %11 : vector<32x128xi1>, vector<32x128xf32>
    %cst_5 = arith.constant 0.000000e+00 : f32
    %13 = vector.broadcast %cst_5 : f32 to vector<32x128xf32>
    %14 = arith.subf %13, %12 : vector<32x128xf32>
    %cst_6 = arith.constant 1.000000e+00 : f32
    %15 = vector.broadcast %cst_6 : f32 to vector<32x128xf32>
    %16 = arith.subf %15, %5 : vector<32x128xf32>
    %17 = arith.select %3, %5, %16 : vector<32x128xi1>, vector<32x128xf32>
    %18 = math.log %17 : vector<32x128xf32>
    %19 = arith.mulf %14, %18 : vector<32x128xf32>
    %c1_i32 = arith.constant 1 : i32
    %20 = vector.broadcast %c1_i32 : i32 to vector<32x128xi32>
    %21 = arith.andi %0, %20 : vector<32x128xi32>
    %c0_i32_7 = arith.constant 0 : i32
    %22 = vector.broadcast %c0_i32_7 : i32 to vector<32x128xi32>
    %23 = arith.cmpi ne, %21, %22 : vector<32x128xi32>
    %cst_8 = arith.constant dense<true> : vector<32x128xi1>
    %24 = arith.xori %23, %cst_8 : vector<32x128xi1>
    %cst_9 = arith.constant 1.000000e+00 : f32
    %25 = vector.broadcast %cst_9 : f32 to vector<32x128xf32>
    %26 = arith.subf %25, %7 : vector<32x128xf32>
    %27 = arith.select %24, %7, %26 : vector<32x128xi1>, vector<32x128xf32>
    %28 = math.log %27 : vector<32x128xf32>
    %cst_10 = arith.constant 0.000000e+00 : f32
    %29 = vector.broadcast %cst_10 : f32 to vector<32x128xf32>
    %30 = arith.subf %29, %28 : vector<32x128xf32>
    %c128_i32 = arith.constant 128 : i32
    %31 = vector.broadcast %c128_i32 : i32 to vector<32x128xi32>
    %32 = arith.andi %0, %31 : vector<32x128xi32>
    %c0_i32_11 = arith.constant 0 : i32
    %33 = vector.broadcast %c0_i32_11 : i32 to vector<32x128xi32>
    %34 = arith.cmpi ne, %32, %33 : vector<32x128xi32>
    %cst_12 = arith.constant dense<true> : vector<32x128xi1>
    %35 = arith.xori %34, %cst_12 : vector<32x128xi1>
    %cst_13 = arith.constant 1.000000e+00 : f32
    %36 = vector.broadcast %cst_13 : f32 to vector<32x128xf32>
    %37 = arith.subf %36, %9 : vector<32x128xf32>
    %38 = arith.select %35, %9, %37 : vector<32x128xi1>, vector<32x128xf32>
    %39 = math.log %38 : vector<32x128xf32>
    %cst_14 = arith.constant 0.000000e+00 : f32
    %40 = vector.broadcast %cst_14 : f32 to vector<32x128xf32>
    %41 = arith.subf %40, %39 : vector<32x128xf32>
    %c16_i32 = arith.constant 16 : i32
    %42 = vector.broadcast %c16_i32 : i32 to vector<32x128xi32>
    %43 = arith.andi %0, %42 : vector<32x128xi32>
    %c0_i32_15 = arith.constant 0 : i32
    %44 = vector.broadcast %c0_i32_15 : i32 to vector<32x128xi32>
    %45 = arith.cmpi ne, %43, %44 : vector<32x128xi32>
    %46 = vector.extract_strided_slice %1 {offsets = [3, 0, 0], sizes = [1, 32, 128], strides = [1, 1, 1]} : vector<10x32x128xf32> to vector<1x32x128xf32>
    %47 = vector.shape_cast %46 : vector<1x32x128xf32> to vector<32x128xf32>
    %c32_i32 = arith.constant 32 : i32
    %48 = vector.broadcast %c32_i32 : i32 to vector<32x128xi32>
    %49 = arith.andi %0, %48 : vector<32x128xi32>
    %c0_i32_16 = arith.constant 0 : i32
    %50 = vector.broadcast %c0_i32_16 : i32 to vector<32x128xi32>
    %51 = arith.cmpi ne, %49, %50 : vector<32x128xi32>
    %52 = vector.extract_strided_slice %1 {offsets = [4, 0, 0], sizes = [1, 32, 128], strides = [1, 1, 1]} : vector<10x32x128xf32> to vector<1x32x128xf32>
    %53 = vector.shape_cast %52 : vector<1x32x128xf32> to vector<32x128xf32>
    %54 = vector.extract_strided_slice %1 {offsets = [5, 0, 0], sizes = [1, 32, 128], strides = [1, 1, 1]} : vector<10x32x128xf32> to vector<1x32x128xf32>
    %55 = vector.shape_cast %54 : vector<1x32x128xf32> to vector<32x128xf32>
    %56 = arith.select %51, %53, %55 : vector<32x128xi1>, vector<32x128xf32>
    %57 = arith.select %45, %47, %56 : vector<32x128xi1>, vector<32x128xf32>
    %58 = math.log %57 : vector<32x128xf32>
    %cst_17 = arith.constant 0.000000e+00 : f32
    %59 = vector.broadcast %cst_17 : f32 to vector<32x128xf32>
    %60 = arith.subf %59, %58 : vector<32x128xf32>
    %c4_i32 = arith.constant 4 : i32
    %61 = vector.broadcast %c4_i32 : i32 to vector<32x128xi32>
    %62 = arith.andi %0, %61 : vector<32x128xi32>
    %c0_i32_18 = arith.constant 0 : i32
    %63 = vector.broadcast %c0_i32_18 : i32 to vector<32x128xi32>
    %64 = arith.cmpi ne, %62, %63 : vector<32x128xi32>
    %65 = vector.extract_strided_slice %1 {offsets = [6, 0, 0], sizes = [1, 32, 128], strides = [1, 1, 1]} : vector<10x32x128xf32> to vector<1x32x128xf32>
    %66 = vector.shape_cast %65 : vector<1x32x128xf32> to vector<32x128xf32>
    %c8_i32 = arith.constant 8 : i32
    %67 = vector.broadcast %c8_i32 : i32 to vector<32x128xi32>
    %68 = arith.andi %0, %67 : vector<32x128xi32>
    %c0_i32_19 = arith.constant 0 : i32
    %69 = vector.broadcast %c0_i32_19 : i32 to vector<32x128xi32>
    %70 = arith.cmpi ne, %68, %69 : vector<32x128xi32>
    %71 = vector.extract_strided_slice %1 {offsets = [7, 0, 0], sizes = [1, 32, 128], strides = [1, 1, 1]} : vector<10x32x128xf32> to vector<1x32x128xf32>
    %72 = vector.shape_cast %71 : vector<1x32x128xf32> to vector<32x128xf32>
    %c64_i32 = arith.constant 64 : i32
    %73 = vector.broadcast %c64_i32 : i32 to vector<32x128xi32>
    %74 = arith.andi %0, %73 : vector<32x128xi32>
    %c0_i32_20 = arith.constant 0 : i32
    %75 = vector.broadcast %c0_i32_20 : i32 to vector<32x128xi32>
    %76 = arith.cmpi ne, %74, %75 : vector<32x128xi32>
    %77 = vector.extract_strided_slice %1 {offsets = [8, 0, 0], sizes = [1, 32, 128], strides = [1, 1, 1]} : vector<10x32x128xf32> to vector<1x32x128xf32>
    %78 = vector.shape_cast %77 : vector<1x32x128xf32> to vector<32x128xf32>
    %79 = vector.extract_strided_slice %1 {offsets = [9, 0, 0], sizes = [1, 32, 128], strides = [1, 1, 1]} : vector<10x32x128xf32> to vector<1x32x128xf32>
    %80 = vector.shape_cast %79 : vector<1x32x128xf32> to vector<32x128xf32>
    %81 = arith.select %76, %78, %80 : vector<32x128xi1>, vector<32x128xf32>
    %82 = arith.select %70, %72, %81 : vector<32x128xi1>, vector<32x128xf32>
    %83 = arith.select %64, %66, %82 : vector<32x128xi1>, vector<32x128xf32>
    %84 = math.log %83 : vector<32x128xf32>
    %cst_21 = arith.constant 0.000000e+00 : f32
    %85 = vector.broadcast %cst_21 : f32 to vector<32x128xf32>
    %86 = arith.subf %85, %84 : vector<32x128xf32>
    %87 = arith.extui %3 : vector<32x128xi1> to vector<32x128xi32>
    %88 = arith.sitofp %87 : vector<32x128xi32> to vector<32x128xf32>
    %89 = arith.addf %30, %41 : vector<32x128xf32>
    %90 = arith.addf %89, %60 : vector<32x128xf32>
    %91 = arith.addf %90, %86 : vector<32x128xf32>
    %92 = arith.mulf %88, %91 : vector<32x128xf32>
    %93 = arith.addf %19, %92 : vector<32x128xf32>
    %94 = vector.extract_strided_slice %93 {offsets = [0, 0], sizes = [8, 128], strides = [1, 1]} : vector<32x128xf32> to vector<8x128xf32>
    %95 = vector.extract_strided_slice %93 {offsets = [8, 0], sizes = [8, 128], strides = [1, 1]} : vector<32x128xf32> to vector<8x128xf32>
    %96 = arith.addf %94, %95 : vector<8x128xf32>
    %97 = vector.extract_strided_slice %93 {offsets = [16, 0], sizes = [8, 128], strides = [1, 1]} : vector<32x128xf32> to vector<8x128xf32>
    %98 = arith.addf %96, %97 : vector<8x128xf32>
    %99 = vector.extract_strided_slice %93 {offsets = [24, 0], sizes = [8, 128], strides = [1, 1]} : vector<32x128xf32> to vector<8x128xf32>
    %100 = arith.addf %98, %99 : vector<8x128xf32>
    %101 = vector.shape_cast %100 : vector<8x128xf32> to vector<1x8x128xf32>
    %c0_22 = arith.constant 0 : index
    %c0_23 = arith.constant 0 : index
    %c0_24 = arith.constant 0 : index
    %102 = vector.load %arg3[%c0_22, %c0_23, %c0_24] : memref<1x8x128xf32, #tpu.memory_space<vmem>>, vector<1x8x128xf32>
    tpu.vector_store %arg3[%c0_22, %c0_23, %c0_24], %101 {strides = array<i32>} : memref<1x8x128xf32, #tpu.memory_space<vmem>>, vector<1x8x128xf32>,
    return
  }
  func.func @transform_0(%arg0: i32) -> (i32, i32) {
    %c0_i32 = arith.constant 0 : i32
    %c0_i32_0 = arith.constant 0 : i32
    return %arg0, %c0_i32 : i32, i32
  }
  func.func @transform_1(%arg0: i32) -> (i32, i32, i32) {
    %c0_i32 = arith.constant 0 : i32
    %c0_i32_0 = arith.constant 0 : i32
    %c0_i32_1 = arith.constant 0 : i32
    return %c0_i32, %arg0, %c0_i32_0 : i32, i32, i32
  }
  func.func @transform_2(%arg0: i32) -> (i32, i32, i32) {
    %c0_i32 = arith.constant 0 : i32
    %c0_i32_0 = arith.constant 0 : i32
    %c0_i32_1 = arith.constant 0 : i32
    return %arg0, %c0_i32, %c0_i32_0 : i32, i32, i32
  }
}

</mosaic_0001>

<llo_original>
// kernel: tpu_custom_call.1
$region0: #{tpu_custom_call.1}
  #allocation0 [shape = 'u32[]', space=smem, size = 0x4, offset = 0x4, fixed_abs, tag = 'smem constant byte address 0x4 - core index']
  #allocation1 [shape = 'u32[144,128]{1,0:T(1,128)}', space=vmem, size = 0x12000, scoped, tag = 'internal scratch']
  %s0 = inlined_call_operand.hbm [shape: s32[32,128], index: 0, kind: input, shape index: {}]
  %s1 = inlined_call_operand.hbm [shape: f32[10,32,128], index: 1, kind: input, shape index: {}]
  %s2 = inlined_call_operand.hbm [shape: f32[1,8,128], index: 2, kind: output, shape index: {}]
  %s3 = sld [smem:[#allocation0]]
  $region26: #{tpu_custom_call.1} parent=0
    _
  %s5 = ssub.s32 1, %s3
  %s6 = scalar_select 0, %s5, %s3
  $region1: #{tpu_custom_call.1} parent=0
    #allocation2 [shape = 'u8[16384]{0}', space=vmem, size = 0x4000, scoped, tag = 'input window, operand 0, single buffered']
    #allocation3 [shape = 's32[1]{0}', space=sflag, size = 0x4, scoped, tag = 'scoped memory for tpu_custom_call.1']
    #allocation4 [shape = 's32[1]{0}', space=sflag, size = 0x4, scoped, tag = 'scoped memory for tpu_custom_call.1']
    #allocation5 [shape = 'u8[163840]{0}', space=vmem, size = 0x28000, scoped, tag = 'input window, operand 1, single buffered']
    #allocation6 [shape = 's32[1]{0}', space=sflag, size = 0x4, scoped, tag = 'scoped memory for tpu_custom_call.1']
    #allocation7 [shape = 'u8[4096]{0}', space=vmem, size = 0x1000, scoped, tag = 'output window, operand 0, single buffered']
    %7 = vsyncpa [#allocation3], 0
    %8 = vsyncpa [#allocation6], 0
    %9 = vsyncpa [#allocation4], 0
    // Predicated region
    $region2: #{tpu_custom_call.1} parent=1 // pred_check
      _
    $region3: #{tpu_custom_call.1} parent=1 // pred_check_branch
      %11 = sbr.rel (0) target = $region5
    $region4: #{tpu_custom_call.1} parent=1 // pred_region
      %s13 = ssub.s32 512, 512
      %14 = vsyncadd [#allocation3], %s13
      %s15 = sshll.u32 [#allocation2], 4
      %s16 = int_to_ptr.vmem [resolvable:$true] %s15
      %21 = dma.hbm_to_vmem [thread:$0]  %s0, 512, %s16, [#allocation3], 128, 128, 8
    $region5: #{tpu_custom_call.1} parent=1 // pred_fallthru
      _
    // Predicated region
    $region6: #{tpu_custom_call.1} parent=1 // pred_check
      _
    $region7: #{tpu_custom_call.1} parent=1 // pred_check_branch
      %23 = sbr.rel (0) target = $region9
    $region8: #{tpu_custom_call.1} parent=1 // pred_region
      %s25 = ssub.s32 5120, 5120
      %26 = vsyncadd [#allocation6], %s25
      %s27 = sshll.u32 [#allocation5], 4
      %s28 = int_to_ptr.vmem [resolvable:$true] %s27
      %33 = dma.hbm_to_vmem [thread:$0]  %s1, 5120, %s28, [#allocation6], 128, 128, 8
    $region9: #{tpu_custom_call.1} parent=1 // pred_fallthru
      _
    // Predicated region
    $region10: #{tpu_custom_call.1} parent=1 // pred_check
      _
    $region11: #{tpu_custom_call.1} parent=1 // pred_check_branch
      %35 = sbr.rel (0) target = $region13
    $region12: #{tpu_custom_call.1} parent=1 // pred_region
      %36 = dma.done [#allocation3], 512
    $region13: #{tpu_custom_call.1} parent=1 // pred_fallthru
      _
    // Predicated region
    $region14: #{tpu_custom_call.1} parent=1 // pred_check
      _
    $region15: #{tpu_custom_call.1} parent=1 // pred_check_branch
      %38 = sbr.rel (0) target = $region17
    $region16: #{tpu_custom_call.1} parent=1 // pred_region
      %39 = dma.done [#allocation6], 5120
    $region17: #{tpu_custom_call.1} parent=1 // pred_fallthru
      _
    %v40 = vld [vmem:[#allocation2] sm:$0xff]
    %v41 = vld [vmem:[#allocation2 + $0x8] sm:$0xff]
    %v42 = vld [vmem:[#allocation2 + $0x10] sm:$0xff]
    %v43 = vld [vmem:[#allocation2 + $0x18] sm:$0xff]
    %v44 = vld [vmem:[#allocation5] sm:$0xff]
    %v45 = vld [vmem:[#allocation5 + $0x8] sm:$0xff]
    %v46 = vld [vmem:[#allocation5 + $0x10] sm:$0xff]
    %v47 = vld [vmem:[#allocation5 + $0x18] sm:$0xff]
    %v48 = vld [vmem:[#allocation5 + $0x20] sm:$0xff]
    %v49 = vld [vmem:[#allocation5 + $0x28] sm:$0xff]
    %v50 = vld [vmem:[#allocation5 + $0x30] sm:$0xff]
    %v51 = vld [vmem:[#allocation5 + $0x38] sm:$0xff]
    %v52 = vld [vmem:[#allocation5 + $0x40] sm:$0xff]
    %v53 = vld [vmem:[#allocation5 + $0x48] sm:$0xff]
    %v54 = vld [vmem:[#allocation5 + $0x50] sm:$0xff]
    %v55 = vld [vmem:[#allocation5 + $0x58] sm:$0xff]
    %v56 = vld [vmem:[#allocation5 + $0x60] sm:$0xff]
    %v57 = vld [vmem:[#allocation5 + $0x68] sm:$0xff]
    %v58 = vld [vmem:[#allocation5 + $0x70] sm:$0xff]
    %v59 = vld [vmem:[#allocation5 + $0x78] sm:$0xff]
    %v60 = vld [vmem:[#allocation5 + $0x80] sm:$0xff]
    %v61 = vld [vmem:[#allocation5 + $0x88] sm:$0xff]
    %v62 = vld [vmem:[#allocation5 + $0x90] sm:$0xff]
    %v63 = vld [vmem:[#allocation5 + $0x98] sm:$0xff]
    %v64 = vld [vmem:[#allocation5 + $0xa0] sm:$0xff]
    %v65 = vld [vmem:[#allocation5 + $0xa8] sm:$0xff]
    %v66 = vld [vmem:[#allocation5 + $0xb0] sm:$0xff]
    %v67 = vld [vmem:[#allocation5 + $0xb8] sm:$0xff]
    %v68 = vld [vmem:[#allocation5 + $0xc0] sm:$0xff]
    %v69 = vld [vmem:[#allocation5 + $0xc8] sm:$0xff]
    %v70 = vld [vmem:[#allocation5 + $0xd0] sm:$0xff]
    %v71 = vld [vmem:[#allocation5 + $0xd8] sm:$0xff]
    %v72 = vld [vmem:[#allocation5 + $0xe0] sm:$0xff]
    %v73 = vld [vmem:[#allocation5 + $0xe8] sm:$0xff]
    %v74 = vld [vmem:[#allocation5 + $0xf0] sm:$0xff]
    %v75 = vld [vmem:[#allocation5 + $0xf8] sm:$0xff]
    %v76 = vld [vmem:[#allocation5 + $0x100] sm:$0xff]
    %v77 = vld [vmem:[#allocation5 + $0x108] sm:$0xff]
    %v78 = vld [vmem:[#allocation5 + $0x110] sm:$0xff]
    %v79 = vld [vmem:[#allocation5 + $0x118] sm:$0xff]
    %v80 = vld [vmem:[#allocation5 + $0x120] sm:$0xff]
    %v81 = vld [vmem:[#allocation5 + $0x128] sm:$0xff]
    %v82 = vld [vmem:[#allocation5 + $0x130] sm:$0xff]
    %v83 = vld [vmem:[#allocation5 + $0x138] sm:$0xff]
    %vm84 = vcmp.ne.s32.totalorder %v40, 0
    %vm85 = vcmp.ne.s32.totalorder %v41, 0
    %vm86 = vcmp.ne.s32.totalorder %v42, 0
    %vm87 = vcmp.ne.s32.totalorder %v43, 0
    %v88 = vsel %vm84, 19.05, 0.51
    %v89 = vsel %vm85, 19.05, 0.51
    %v90 = vsel %vm86, 19.05, 0.51
    %v91 = vsel %vm87, 19.05, 0.51
    %v92 = vsub.f32 0.0, %v88
    %v93 = vsub.f32 0.0, %v89
    %v94 = vsub.f32 0.0, %v90
    %v95 = vsub.f32 0.0, %v91
    %v96 = vsub.f32 1.0, %v44
    %v97 = vsub.f32 1.0, %v45
    %v98 = vsub.f32 1.0, %v46
    %v99 = vsub.f32 1.0, %v47
    %v100 = vsel %vm84, %v44, %v96
    %v101 = vsel %vm85, %v45, %v97
    %v102 = vsel %vm86, %v46, %v98
    %v103 = vsel %vm87, %v47, %v99
    %v104 = vlog2.pop %v100
    %v105 = vmul.f32 %v104, 0.6931472
    %v106 = vlog2.pop %v101
    %v107 = vmul.f32 %v106, 0.6931472
    %v108 = vlog2.pop %v102
    %v109 = vmul.f32 %v108, 0.6931472
    %v110 = vlog2.pop %v103
    %v111 = vmul.f32 %v110, 0.6931472
    %v112 = vmul.f32 %v92, %v105
    %v113 = vmul.f32 %v93, %v107
    %v114 = vmul.f32 %v94, %v109
    %v115 = vmul.f32 %v95, %v111
    %v116 = vand.u32 %v40, 1
    %v117 = vand.u32 %v41, 1
    %v118 = vand.u32 %v42, 1
    %v119 = vand.u32 %v43, 1
    %vm120 = vcmp.ne.s32.totalorder %v116, 0
    %vm121 = vcmp.ne.s32.totalorder %v117, 0
    %vm122 = vcmp.ne.s32.totalorder %v118, 0
    %vm123 = vcmp.ne.s32.totalorder %v119, 0
    %vm124 = vmxor %vm120, 1
    %vm125 = vmxor %vm121, 1
    %vm126 = vmxor %vm122, 1
    %vm127 = vmxor %vm123, 1
    %v128 = vsub.f32 1.0, %v48
    %v129 = vsub.f32 1.0, %v49
    %v130 = vsub.f32 1.0, %v50
    %v131 = vsub.f32 1.0, %v51
    %v132 = vsel %vm124, %v48, %v128
    %v133 = vsel %vm125, %v49, %v129
    %v134 = vsel %vm126, %v50, %v130
    %v135 = vsel %vm127, %v51, %v131
    %v136 = vlog2.pop %v132
    %v137 = vmul.f32 %v136, 0.6931472
    %v138 = vlog2.pop %v133
    %v139 = vmul.f32 %v138, 0.6931472
    %v140 = vlog2.pop %v134
    %v141 = vmul.f32 %v140, 0.6931472
    %v142 = vlog2.pop %v135
    %v143 = vmul.f32 %v142, 0.6931472
    %v144 = vsub.f32 0.0, %v137
    %v145 = vsub.f32 0.0, %v139
    %v146 = vsub.f32 0.0, %v141
    %v147 = vsub.f32 0.0, %v143
    %v148 = vand.u32 %v40, 128
    %v149 = vand.u32 %v41, 128
    %v150 = vand.u32 %v42, 128
    %v151 = vand.u32 %v43, 128
    %vm152 = vcmp.ne.s32.totalorder %v148, 0
    %vm153 = vcmp.ne.s32.totalorder %v149, 0
    %vm154 = vcmp.ne.s32.totalorder %v150, 0
    %vm155 = vcmp.ne.s32.totalorder %v151, 0
    %vm156 = vmxor %vm152, 1
    %vm157 = vmxor %vm153, 1
    %vm158 = vmxor %vm154, 1
    %vm159 = vmxor %vm155, 1
    %v160 = vsub.f32 1.0, %v52
    %v161 = vsub.f32 1.0, %v53
    %v162 = vsub.f32 1.0, %v54
    %v163 = vsub.f32 1.0, %v55
    %v164 = vsel %vm156, %v52, %v160
    %v165 = vsel %vm157, %v53, %v161
    %v166 = vsel %vm158, %v54, %v162
    %v167 = vsel %vm159, %v55, %v163
    %v168 = vlog2.pop %v164
    %v169 = vmul.f32 %v168, 0.6931472
    %v170 = vlog2.pop %v165
    %v171 = vmul.f32 %v170, 0.6931472
    %v172 = vlog2.pop %v166
    %v173 = vmul.f32 %v172, 0.6931472
    %v174 = vlog2.pop %v167
    %v175 = vmul.f32 %v174, 0.6931472
    %v176 = vsub.f32 0.0, %v169
    %v177 = vsub.f32 0.0, %v171
    %v178 = vsub.f32 0.0, %v173
    %v179 = vsub.f32 0.0, %v175
    %v180 = vand.u32 %v40, 16
    %v181 = vand.u32 %v41, 16
    %v182 = vand.u32 %v42, 16
    %v183 = vand.u32 %v43, 16
    %vm184 = vcmp.ne.s32.totalorder %v180, 0
    %vm185 = vcmp.ne.s32.totalorder %v181, 0
    %vm186 = vcmp.ne.s32.totalorder %v182, 0
    %vm187 = vcmp.ne.s32.totalorder %v183, 0
    %v188 = vand.u32 %v40, 32
    %v189 = vand.u32 %v41, 32
    %v190 = vand.u32 %v42, 32
    %v191 = vand.u32 %v43, 32
    %vm192 = vcmp.ne.s32.totalorder %v188, 0
    %vm193 = vcmp.ne.s32.totalorder %v189, 0
    %vm194 = vcmp.ne.s32.totalorder %v190, 0
    %vm195 = vcmp.ne.s32.totalorder %v191, 0
    %v196 = vsel %vm192, %v60, %v64
    %v197 = vsel %vm193, %v61, %v65
    %v198 = vsel %vm194, %v62, %v66
    %v199 = vsel %vm195, %v63, %v67
    %v200 = vsel %vm184, %v56, %v196
    %v201 = vsel %vm185, %v57, %v197
    %v202 = vsel %vm186, %v58, %v198
    %v203 = vsel %vm187, %v59, %v199
    %v204 = vlog2.pop %v200
    %v205 = vmul.f32 %v204, 0.6931472
    %v206 = vlog2.pop %v201
    %v207 = vmul.f32 %v206, 0.6931472
    %v208 = vlog2.pop %v202
    %v209 = vmul.f32 %v208, 0.6931472
    %v210 = vlog2.pop %v203
    %v211 = vmul.f32 %v210, 0.6931472
    %v212 = vsub.f32 0.0, %v205
    %v213 = vsub.f32 0.0, %v207
    %v214 = vsub.f32 0.0, %v209
    %v215 = vsub.f32 0.0, %v211
    %v216 = vand.u32 %v40, 4
    %v217 = vand.u32 %v41, 4
    %v218 = vand.u32 %v42, 4
    %v219 = vand.u32 %v43, 4
    %vm220 = vcmp.ne.s32.totalorder %v216, 0
    %vm221 = vcmp.ne.s32.totalorder %v217, 0
    %vm222 = vcmp.ne.s32.totalorder %v218, 0
    %vm223 = vcmp.ne.s32.totalorder %v219, 0
    %v224 = vand.u32 %v40, 8
    %v225 = vand.u32 %v41, 8
    %v226 = vand.u32 %v42, 8
    %v227 = vand.u32 %v43, 8
    %vm228 = vcmp.ne.s32.totalorder %v224, 0
    %vm229 = vcmp.ne.s32.totalorder %v225, 0
    %vm230 = vcmp.ne.s32.totalorder %v226, 0
    %vm231 = vcmp.ne.s32.totalorder %v227, 0
    %v232 = vand.u32 %v40, 64
    %v233 = vand.u32 %v41, 64
    %v234 = vand.u32 %v42, 64
    %v235 = vand.u32 %v43, 64
    %vm236 = vcmp.ne.s32.totalorder %v232, 0
    %vm237 = vcmp.ne.s32.totalorder %v233, 0
    %vm238 = vcmp.ne.s32.totalorder %v234, 0
    %vm239 = vcmp.ne.s32.totalorder %v235, 0
    %v240 = vsel %vm236, %v76, %v80
    %v241 = vsel %vm237, %v77, %v81
    %v242 = vsel %vm238, %v78, %v82
    %v243 = vsel %vm239, %v79, %v83
    %v244 = vsel %vm228, %v72, %v240
    %v245 = vsel %vm229, %v73, %v241
    %v246 = vsel %vm230, %v74, %v242
    %v247 = vsel %vm231, %v75, %v243
    %v248 = vsel %vm220, %v68, %v244
    %v249 = vsel %vm221, %v69, %v245
    %v250 = vsel %vm222, %v70, %v246
    %v251 = vsel %vm223, %v71, %v247
    %v252 = vlog2.pop %v248
    %v253 = vmul.f32 %v252, 0.6931472
    %v254 = vlog2.pop %v249
    %v255 = vmul.f32 %v254, 0.6931472
    %v256 = vlog2.pop %v250
    %v257 = vmul.f32 %v256, 0.6931472
    %v258 = vlog2.pop %v251
    %v259 = vmul.f32 %v258, 0.6931472
    %v260 = vsub.f32 0.0, %v253
    %v261 = vsub.f32 0.0, %v255
    %v262 = vsub.f32 0.0, %v257
    %v263 = vsub.f32 0.0, %v259
    %v264 = vsel %vm84, 1, 0
    %v265 = vsel %vm85, 1, 0
    %v266 = vsel %vm86, 1, 0
    %v267 = vsel %vm87, 1, 0
    %v268 = vcvt.s32.f32 %v264
    %v269 = vcvt.s32.f32 %v265
    %v270 = vcvt.s32.f32 %v266
    %v271 = vcvt.s32.f32 %v267
    %v272 = vadd.f32 %v144, %v176
    %v273 = vadd.f32 %v145, %v177
    %v274 = vadd.f32 %v146, %v178
    %v275 = vadd.f32 %v147, %v179
    %v276 = vadd.f32 %v272, %v212
    %v277 = vadd.f32 %v273, %v213
    %v278 = vadd.f32 %v274, %v214
    %v279 = vadd.f32 %v275, %v215
    %v280 = vadd.f32 %v276, %v260
    %v281 = vadd.f32 %v277, %v261
    %v282 = vadd.f32 %v278, %v262
    %v283 = vadd.f32 %v279, %v263
    %v284 = vmul.f32 %v268, %v280
    %v285 = vmul.f32 %v269, %v281
    %v286 = vmul.f32 %v270, %v282
    %v287 = vmul.f32 %v271, %v283
    %v288 = vadd.f32 %v112, %v284
    %v289 = vadd.f32 %v113, %v285
    %v290 = vadd.f32 %v114, %v286
    %v291 = vadd.f32 %v115, %v287
    %v292 = vadd.f32 %v288, %v289
    %v293 = vadd.f32 %v292, %v290
    %v294 = vadd.f32 %v293, %v291
    %295 = vst [vmem:[#allocation7] sm:$0xff] %v294
    // Predicated region
    $region18: #{tpu_custom_call.1} parent=1 // pred_check
      _
    $region19: #{tpu_custom_call.1} parent=1 // pred_check_branch
      %297 = sbr.rel (0) target = $region21
    $region20: #{tpu_custom_call.1} parent=1 // pred_region
      %s299 = ssub.s32 128, 128
      %300 = vsyncadd [#allocation4], %s299
      %s302 = sshll.u32 [#allocation7], 4
      %s303 = int_to_ptr.vmem [resolvable:$true] %s302
      %305 = dma.vmem_to_hbm [thread:$0]  %s303, 128, %s2, [#allocation4]
    $region21: #{tpu_custom_call.1} parent=1 // pred_fallthru
      _
    // Predicated region
    $region22: #{tpu_custom_call.1} parent=1 // pred_check
      _
    $region23: #{tpu_custom_call.1} parent=1 // pred_check_branch
      %307 = sbr.rel (0) target = $region25
    $region24: #{tpu_custom_call.1} parent=1 // pred_region
      %308 = dma.done [#allocation4], 128
    $region25: #{tpu_custom_call.1} parent=1 // pred_fallthru
      _
    %309 = vsyncpa [#allocation3], 1
    %310 = vsyncpa [#allocation6], 1
    %311 = vsyncpa [#allocation4], 1

</llo_original>
